<compile_context>
chip_gen: v6e
topology: v6e:2x2x1
jax: 0.10.0
libtpu: 0.0.40
codegen_flags: <defaults>
</compile_context>

<pallas_src>
import math

import jax
import jax.numpy as jnp
from jax import lax
from jax.experimental import pallas as pl
from jax.experimental.pallas import tpu as pltpu


# -----------------------------------------------------------------------------
# Kernels
# -----------------------------------------------------------------------------
def _indep_linear_kernel_accout(x_ref, w_ref, b_ref, o_ref):
    """float32-output variant: accumulate straight into the resident out block.

    Block shapes:
      x_ref: (cb, tb, tk)   w_ref: (cb, tk, tn)   b_ref: (cb, 1, tn)
      o_ref: (cb, tb, tn)   (f32, resident across the K grid axis)
    """
    k = pl.program_id(3)

    @pl.when(k == 0)
    def _init():
        o_ref[...] = jnp.zeros_like(o_ref)

    # cb independent (tb, tk) @ (tk, tn) matmuls on the MXU, f32 accumulation.
    o_ref[...] += lax.dot_general(
        x_ref[...],
        w_ref[...],
        dimension_numbers=(((2,), (1,)), ((0,), (0,))),  # batch dim = channel
        preferred_element_type=jnp.float32,
    )

    @pl.when(k == pl.num_programs(3) - 1)
    def _finalize():
        o_ref[...] += b_ref[...].astype(jnp.float32)


def _indep_linear_kernel_scratch(x_ref, w_ref, b_ref, o_ref, acc_ref):
    """Narrow-output variant (e.g. bf16 out): f32 VMEM accumulator scratch."""
    k = pl.program_id(3)

    @pl.when(k == 0)
    def _init():
        acc_ref[...] = jnp.zeros_like(acc_ref)

    acc_ref[...] += lax.dot_general(
        x_ref[...],
        w_ref[...],
        dimension_numbers=(((2,), (1,)), ((0,), (0,))),
        preferred_element_type=jnp.float32,
    )

    @pl.when(k == pl.num_programs(3) - 1)
    def _finalize():
        o_ref[...] = (acc_ref[...] + b_ref[...].astype(jnp.float32)).astype(o_ref.dtype)


# -----------------------------------------------------------------------------
# Wrapper
# -----------------------------------------------------------------------------
def _round_up(a, m):
    return ((a + m - 1) // m) * m


def _largest_tile(padded_dim, unit, cap):
    """Largest multiple of `unit` that divides `padded_dim` and is <= cap."""
    n_units = padded_dim // unit
    cap_units = max(1, cap // unit)
    best = 1
    for d in range(1, n_units + 1):
        if n_units % d == 0 and d <= cap_units:
            best = d
    return best * unit


def indepent_linear(x, weight, bias, *, compute_dtype=None):
    """x: (B, C, 1, s_in); weight: (C, 1, s_in, s_out); bias: (C, 1, s_out).

    Returns (B, C, 1, s_out) with dtype promote(x.dtype, weight.dtype),
    matching the PyTorch module's forward (dropout is never applied there).
    Pass bf16-stored params (or compute_dtype=jnp.bfloat16) to halve the
    dominant weight HBM stream; accumulation is always float32.
    """
    B, C, N, s_in = x.shape
    assert N == 1, "weight N-dim is 1, so x must have N == 1"
    assert weight.shape[:3] == (C, 1, s_in), "weight must be (C, 1, s_in, s_out)"
    s_out = weight.shape[-1]

    out_dtype = jnp.promote_types(x.dtype, weight.dtype)
    use_scratch = jnp.dtype(out_dtype) != jnp.dtype(jnp.float32)

    # ---------------- hardware budget (per-generation) ----------------------
    try:
        vmem_cap = int(pltpu.get_tpu_info().vmem_capacity_bytes)
    except Exception:  # fall back to the smallest per-core VMEM (v7x)
        vmem_cap = 64 * 1024 * 1024
    big_vmem = vmem_cap >= 96 * 1024 * 1024        # v5e/v6e: 128 MiB; v7x: 64 MiB
    budget = min(int(vmem_cap * 0.70), 112 * 1024 * 1024)

    x_dt = compute_dtype if compute_dtype is not None else x.dtype
    w_dt = compute_dtype if compute_dtype is not None else weight.dtype
    xb = jnp.dtype(x_dt).itemsize
    wb = jnp.dtype(w_dt).itemsize
    ob = jnp.dtype(out_dtype).itemsize

    # ---------------- tile sizing -------------------------------------------
    cb = min(16 if big_vmem else 8, C)             # channels per grid step
    tk_cap = tn_cap = 1024 if big_vmem else 512
    tb_cap = 256

    # K (reduction) dim.
    if s_in <= tk_cap:
        tk, s_in_p, k_tiled = s_in, s_in, False
    else:
        s_in_p = _round_up(s_in, 128)              # pad <= 127, not per-tile
        tk = _largest_tile(s_in_p, 128, tk_cap)
        k_tiled = True

    # N (output lane) dim: lane-dense stores; padding never exceeds 127 lanes.
    s_out_p = _round_up(s_out, 128)
    tn = _largest_tile(s_out_p, 128, tn_cap)

    # B (rows) dim: each per-channel dot is (tb, tk)@(tk, tn); tile B only when
    # large so the acc/out blocks (ceil(tb/8)*8 sublane rows) stay in VMEM.
    if B <= tb_cap:
        tb, B_p, b_tiled = B, B, False
    else:
        B_p = _round_up(B, 8)
        tb = _largest_tile(B_p, 8, tb_cap)
        b_tiled = True

    # Shrink tiles until the double-buffered working set fits the VMEM budget.
    def _est(cb_, tb_, tk_, tn_):
        tb8 = _round_up(tb_, 8)
        est = 2 * cb_ * tb8 * _round_up(tk_, 128) * xb        # x   (dbl buf)
        est += 2 * cb_ * _round_up(tk_, 8) * tn_ * wb         # W   (dbl buf)
        est += 2 * cb_ * 8 * tn_ * wb                         # bias
        est += 2 * cb_ * tb8 * tn_ * ob                       # out (dbl buf)
        if use_scratch:
            est += cb_ * tb8 * tn_ * 4                        # f32 acc
        return est

    while _est(cb, tb, tk, tn) > budget:
        if cb > 1:
            cb = (cb + 1) // 2
        elif tn > 128:
            tn = _largest_tile(s_out_p, 128, tn // 2)
        elif k_tiled and tk > 128:
            tk = _largest_tile(s_in_p, 128, tk // 2)
        elif b_tiled and tb > 8:
            tb = _largest_tile(B_p, 8, tb // 2)
        else:
            break

    c_pad = _round_up(C, cb)

    # Megacore (v7x: 2 TensorCores): make the combined parallel extent >= 2.
    if (c_pad // cb) * (B_p // tb) * (s_out_p // tn) < 2 and C >= 2:
        cb = max(1, (C + 1) // 2)
        c_pad = _round_up(C, cb)

    grid = (c_pad // cb, B_p // tb, s_out_p // tn, s_in_p // tk)  # (C, B, N, K)

    # ---------------- data layout -------------------------------------------
    # TODO(synk): if the producer/consumer can use channel-major (C, B, s)
    # activations (or allow_input_fusion is enabled), these two activation
    # transposes can be removed entirely; they are small relative to W.
    x_cbi = jnp.transpose(x[:, :, 0, :], (1, 0, 2))    # (C, B, s_in)
    w_cio = weight[:, 0, :, :]                         # (C, s_in, s_out) - free view
    b_c1o = bias                                       # (C, 1, s_out)

    if compute_dtype is not None:
        x_cbi = x_cbi.astype(compute_dtype)
        w_cio = w_cio.astype(compute_dtype)
        b_c1o = b_c1o.astype(compute_dtype)

    # Zero-pad only when actually needed (pad amounts are <= 127 lanes /
    # <= 7 sublanes / < cb channels by construction); in the common
    # tile-aligned case the dominant weight stream is passed through untouched.
    def _pad3(a, d0, d1, d2):
        pads = ((0, d0 - a.shape[0]), (0, d1 - a.shape[1]), (0, d2 - a.shape[2]))
        return a if all(p == (0, 0) for p in pads) else jnp.pad(a, pads)

    x_in = _pad3(x_cbi, c_pad, B_p, s_in_p)
    w_in = _pad3(w_cio, c_pad, s_in_p, s_out_p)
    b_in = _pad3(b_c1o, c_pad, 1, s_out_p)

    n_blocks = s_out_p // tn
    b_blocks = B_p // tb
    cost = pl.CostEstimate(
        flops=2 * B * C * s_in * s_out,
        transcendentals=0,
        bytes_accessed=(
            x_in.size * xb * n_blocks          # x re-streamed per N block
            + w_in.size * wb * b_blocks        # W re-streamed per B block
            + b_in.size * wb
            + c_pad * B_p * s_out_p * ob
        ),
    )

    kernel = _indep_linear_kernel_scratch if use_scratch else _indep_linear_kernel_accout
    scratch = [pltpu.VMEM((cb, tb, tn), jnp.float32)] if use_scratch else []

    out_cbo = pl.pallas_call(
        kernel,
        out_shape=jax.ShapeDtypeStruct((c_pad, B_p, s_out_p), out_dtype),
        grid_spec=pltpu.PrefetchScalarGridSpec(
            num_scalar_prefetch=0,
            grid=grid,
            in_specs=[
                pl.BlockSpec((cb, tb, tk), lambda c, b, n, k: (c, b, k)),
                # TODO(synk): add pipeline_mode=pl.Buffered(3) on this weight
                # spec if an xprof check on v7x shows exposed weight-DMA gaps.
                pl.BlockSpec((cb, tk, tn), lambda c, b, n, k: (c, k, n)),
                pl.BlockSpec((cb, 1, tn), lambda c, b, n, k: (c, 0, n)),
            ],
            out_specs=pl.BlockSpec((cb, tb, tn), lambda c, b, n, k: (c, b, n)),
            scratch_shapes=scratch,
        ),
        compiler_params=pltpu.CompilerParams(
            dimension_semantics=("parallel", "parallel", "parallel", "arbitrary"),
            vmem_limit_bytes=int(budget),
        ),
        cost_estimate=cost,
    )(x_in, w_in, b_in)

    # Strip channel/row/lane padding, back to PyTorch BCNO convention.
    out = jnp.transpose(out_cbo[:C, :B, :s_out], (1, 0, 2))  # (B, C, s_out)
    return out[:, :, None, :]                                # (B, C, 1, s_out)


def _xavier_uniform(key, shape):
    # PyTorch xavier_uniform_ for an N-D tensor:
    #   fan_in  = size(1) * prod(size(2:)),  fan_out = size(0) * prod(size(2:))
    rf = 1
    for d in shape[2:]:
        rf *= d
    fan_in = shape[1] * rf
    fan_out = shape[0] * rf
    a = math.sqrt(6.0 / (fan_in + fan_out))
    return jax.random.uniform(key, shape, jnp.float32, minval=-a, maxval=a)


if __name__ == "__main__":
    B, C, s_in, s_out = 2, 4, 16, 32

    key = jax.random.PRNGKey(0)
    kx, kw, kb = jax.random.split(key, 3)

    x = jax.random.normal(kx, (B, C, 1, s_in), jnp.float32)
    weight = _xavier_uniform(kw, (C, 1, s_in, s_out))
    bias = _xavier_uniform(kb, (C, 1, s_out))

    # Pure-JAX reference (same semantics as the torch einsum + bias).
    ref = jnp.einsum("BCNI,CNIO->BCNO", x, weight) + bias

    # Default (f32) path: accumulates directly into the output block.
    out = jax.block_until_ready(indepent_linear(x, weight, bias))
    assert out.shape == (B, C, 1, s_out)
    assert jnp.allclose(out, ref, atol=1e-5, rtol=1e-5)

    # bf16-stored-params path (halved weight HBM stream, f32 accumulation,
    # scratch-accumulator kernel variant).
    out_bf16 = jax.block_until_ready(
        indepent_linear(
            x.astype(jnp.bfloat16),
            weight.astype(jnp.bfloat16),
            bias.astype(jnp.bfloat16),
        )
    )
    assert out_bf16.dtype == jnp.bfloat16
    assert jnp.allclose(out_bf16.astype(jnp.float32), ref, atol=5e-2, rtol=5e-2)

    print("KERNEL_OK")
</pallas_src>

<mosaic_0001>
module attributes {stable_mosaic.version = 11 : i64} {
  func.func @_indep_linear_kernel_accout(%arg0: i32, %arg1: i32, %arg2: i32, %arg3: i32, %arg4: memref<2x2x16xf32, #tpu.memory_space<vmem>>, %arg5: memref<2x16x128xf32, #tpu.memory_space<vmem>>, %arg6: memref<2x1x128xf32, #tpu.memory_space<vmem>>, %arg7: memref<2x2x128xf32, #tpu.memory_space<vmem>>) attributes {dimension_semantics = [#tpu.dimension_semantics<parallel>, #tpu.dimension_semantics<parallel>, #tpu.dimension_semantics<parallel>, #tpu.dimension_semantics<arbitrary>], iteration_bounds = array<i64: 2, 1, 1, 1>, scalar_prefetch = 0 : i64, scratch_operands = 0 : i64, tpu.core_type = #tpu.core_type<tc>, window_params = [{transform_indices = @transform_0, window_bounds = array<i64: 2, 2, 16>}, {transform_indices = @transform_1, window_bounds = array<i64: 2, 16, 128>}, {transform_indices = @transform_2, window_bounds = array<i64: 2, 1, 128>}, {transform_indices = @transform_3, window_bounds = array<i64: 2, 2, 128>}]} {
    %c0_i32 = arith.constant 0 : i32
    %0 = arith.cmpi eq, %arg3, %c0_i32 : i32
    %1 = arith.extui %0 : i1 to i32
    %c0_i32_0 = arith.constant 0 : i32
    %2 = arith.cmpi ne, %1, %c0_i32_0 : i32
    scf.if %2 {
      %cst_14 = arith.constant 0.000000e+00 : f32
      %12 = vector.broadcast %cst_14 : f32 to vector<2x2x128xf32>
      %c0_15 = arith.constant 0 : index
      %c0_16 = arith.constant 0 : index
      %c0_17 = arith.constant 0 : index
      %13 = vector.load %arg7[%c0_15, %c0_16, %c0_17] : memref<2x2x128xf32, #tpu.memory_space<vmem>>, vector<2x2x128xf32>
      tpu.vector_store %arg7[%c0_15, %c0_16, %c0_17], %12 {strides = array<i32>} : memref<2x2x128xf32, #tpu.memory_space<vmem>>, vector<2x2x128xf32>,
    } else {
    }
    %c0 = arith.constant 0 : index
    %c0_1 = arith.constant 0 : index
    %c0_2 = arith.constant 0 : index
    %3 = vector.load %arg7[%c0, %c0_1, %c0_2] : memref<2x2x128xf32, #tpu.memory_space<vmem>>, vector<2x2x128xf32>
    %c0_3 = arith.constant 0 : index
    %c0_4 = arith.constant 0 : index
    %c0_5 = arith.constant 0 : index
    %4 = vector.load %arg4[%c0_3, %c0_4, %c0_5] : memref<2x2x16xf32, #tpu.memory_space<vmem>>, vector<2x2x16xf32>
    %c0_6 = arith.constant 0 : index
    %c0_7 = arith.constant 0 : index
    %c0_8 = arith.constant 0 : index
    %5 = vector.load %arg5[%c0_6, %c0_7, %c0_8] : memref<2x16x128xf32, #tpu.memory_space<vmem>>, vector<2x16x128xf32>
    %cst = arith.constant dense<0.000000e+00> : vector<2x2x128xf32>
    %6 = tpu.matmul %4, %5, %cst {dimension_numbers = #tpu.dot_dimension_numbers<[2], [1], [1], [2], [0, 0, 0, 1, 1, 2], [0], [0]>} : vector<2x2x16xf32>, vector<2x16x128xf32>, vector<2x2x128xf32> -> vector<2x2x128xf32>
    %7 = arith.addf %3, %6 : vector<2x2x128xf32>
    %c0_9 = arith.constant 0 : index
    %c0_10 = arith.constant 0 : index
    %c0_11 = arith.constant 0 : index
    %8 = vector.load %arg7[%c0_9, %c0_10, %c0_11] : memref<2x2x128xf32, #tpu.memory_space<vmem>>, vector<2x2x128xf32>
    tpu.vector_store %arg7[%c0_9, %c0_10, %c0_11], %7 {strides = array<i32>} : memref<2x2x128xf32, #tpu.memory_space<vmem>>, vector<2x2x128xf32>,
    %c0_i32_12 = arith.constant 0 : i32
    %9 = arith.cmpi eq, %arg3, %c0_i32_12 : i32
    %10 = arith.extui %9 : i1 to i32
    %c0_i32_13 = arith.constant 0 : i32
    %11 = arith.cmpi ne, %10, %c0_i32_13 : i32
    scf.if %11 {
      %c0_14 = arith.constant 0 : index
      %c0_15 = arith.constant 0 : index
      %c0_16 = arith.constant 0 : index
      %12 = vector.load %arg7[%c0_14, %c0_15, %c0_16] : memref<2x2x128xf32, #tpu.memory_space<vmem>>, vector<2x2x128xf32>
      %c0_17 = arith.constant 0 : index
      %c0_18 = arith.constant 0 : index
      %c0_19 = arith.constant 0 : index
      %13 = vector.load %arg6[%c0_17, %c0_18, %c0_19] : memref<2x1x128xf32, #tpu.memory_space<vmem>>, vector<2x1x128xf32>
      %14 = vector.broadcast %13 : vector<2x1x128xf32> to vector<2x2x128xf32>
      %15 = arith.addf %12, %14 : vector<2x2x128xf32>
      %c0_20 = arith.constant 0 : index
      %c0_21 = arith.constant 0 : index
      %c0_22 = arith.constant 0 : index
      %16 = vector.load %arg7[%c0_20, %c0_21, %c0_22] : memref<2x2x128xf32, #tpu.memory_space<vmem>>, vector<2x2x128xf32>
      tpu.vector_store %arg7[%c0_20, %c0_21, %c0_22], %15 {strides = array<i32>} : memref<2x2x128xf32, #tpu.memory_space<vmem>>, vector<2x2x128xf32>,
    } else {
    }
    return
  }
  func.func @transform_0(%arg0: i32, %arg1: i32, %arg2: i32, %arg3: i32) -> (i32, i32, i32) {
    %c0_i32 = arith.constant 0 : i32
    return %arg0, %arg1, %arg3 : i32, i32, i32
  }
  func.func @transform_1(%arg0: i32, %arg1: i32, %arg2: i32, %arg3: i32) -> (i32, i32, i32) {
    %c0_i32 = arith.constant 0 : i32
    return %arg0, %arg3, %arg2 : i32, i32, i32
  }
  func.func @transform_2(%arg0: i32, %arg1: i32, %arg2: i32, %arg3: i32) -> (i32, i32, i32) {
    %c0_i32 = arith.constant 0 : i32
    %c0_i32_0 = arith.constant 0 : i32
    return %arg0, %c0_i32, %arg2 : i32, i32, i32
  }
  func.func @transform_3(%arg0: i32, %arg1: i32, %arg2: i32, %arg3: i32) -> (i32, i32, i32) {
    %c0_i32 = arith.constant 0 : i32
    return %arg0, %arg1, %arg2 : i32, i32, i32
  }
}

</mosaic_0001>

<llo_original>
// kernel: tpu_custom_call.1
$region0: #{tpu_custom_call.1}
  #allocation0 [shape = 'u32[]', space=smem, size = 0x4, offset = 0x4, fixed_abs, tag = 'smem constant byte address 0x4 - core index']
  #allocation1 [shape = 'u32[144,128]{1,0:T(1,128)}', space=vmem, size = 0x12000, scoped, tag = 'internal scratch']
  %s0 = inlined_call_operand.hbm [shape: f32[4,2,16], index: 0, kind: input, shape index: {}]
  %s1 = inlined_call_operand.hbm [shape: f32[4,16,128], index: 1, kind: input, shape index: {}]
  %s2 = inlined_call_operand.hbm [shape: f32[4,1,128], index: 2, kind: input, shape index: {}]
  %s3 = inlined_call_operand.hbm [shape: f32[4,2,128], index: 3, kind: output, shape index: {}]
  %s4 = sld [smem:[#allocation0]]
  $region65: #{tpu_custom_call.1} parent=0
    _
  %s6 = ssub.s32 1, %s4
  %s7 = scalar_select 0, %s6, %s4
  $region1: #{tpu_custom_call.1} parent=0
    #allocation2 [shape = 'u8[4096]{0}', space=vmem, size = 0x1000, scoped, tag = 'input window, operand 0']
    #allocation3 [shape = 's32[2]{0}', space=sflag, size = 0x8, scoped, tag = 'scoped memory for tpu_custom_call.1']
    #allocation4 [shape = 's32[2]{0}', space=sflag, size = 0x8, scoped, tag = 'scoped memory for tpu_custom_call.1']
    #allocation5 [shape = 'u8[32768]{0}', space=vmem, size = 0x8000, scoped, tag = 'input window, operand 1']
    #allocation6 [shape = 's32[2]{0}', space=sflag, size = 0x8, scoped, tag = 'scoped memory for tpu_custom_call.1']
    #allocation7 [shape = 'u8[2048]{0}', space=vmem, size = 0x800, scoped, tag = 'input window, operand 2']
    #allocation8 [shape = 'u8[4096]{0}', space=vmem, size = 0x1000, scoped, tag = 'output window, operand 0']
    %8 = vsyncpa [#allocation3], 0
    %s9 = scalar_lea.sflag [#allocation3], 1
    %10 = vsyncpa %s9, 0
    %11 = vsyncpa [#allocation6], 0
    %s12 = scalar_lea.sflag [#allocation6], 1
    %13 = vsyncpa %s12, 0
    %14 = vsyncpa [#allocation4], 0
    %s15 = scalar_lea.sflag [#allocation4], 1
    %16 = vsyncpa %s15, 0
    loop: start=0, step=1, limit=4
    $region2: #{tpu_custom_call.1} parent=1 // loop_pre_header
      _
    $region3: #{tpu_custom_call.1} parent=1 // loop_header
      %s18 = sphi 0, %s22
      %p19 = scmp.ge.s32.totalorder %s18, 4
      %s25 = sphi 0, %s51
      %s26 = sphi 0, %s47
      %s27 = sphi 0, %s43
      %s28 = sphi 0, %s39
      %s29 = sphi 0, %s25
      %s30 = sphi 0, %s26
      %s31 = sphi 0, %s27
      %s32 = sphi 0, %s28
      %s33 = sphi 0, %s29
      %s34 = sphi 0, %s30
      %s35 = sphi 0, %s31
      %s36 = sphi 0, %s32
      %s58 = sphi 0, %s60
      %s61 = sphi 0, %s58
      %s62 = sphi 0, %s61
      %s78 = sphi 0, %s62
      %s88 = sphi 0, %s90
      %s91 = sphi 0, %s88
      %s92 = sphi 0, %s91
      %s108 = sphi 0, %s92
      %s116 = sphi 0, %s118
      %s119 = sphi 0, %s116
      %s120 = sphi 0, %s119
      %s136 = sphi 0, %s120
      %s146 = sphi 0, %s148
      %s149 = sphi 0, %s146
      %s150 = sphi 0, %s149
      %s166 = sphi 0, %s150
    $region4: #{tpu_custom_call.1} parent=1 // loop_header_branch
      %21 = sbr.rel (%p19) target = $region8
    $region5: #{tpu_custom_call.1} parent=1 // loop_body
      %s23 = ssub.s32 %s18, 1
      %s24 = ssub.s32 %s18, 2
      %s37 = sadd.s32 1, %s28
      %p38 = scmp.ge.s32.totalorder %s37, 1
      %s39 = scalar_select %p38, 0, %s37
      %s40 = sadd.s32 1, %s27
      %s41 = scalar_select %p38, %s40, %s27
      %p42 = scmp.ge.s32.totalorder %s41, 1
      %s43 = scalar_select %p42, 0, %s41
      %s44 = sadd.s32 1, %s26
      %s45 = scalar_select %p42, %s44, %s26
      %p46 = scmp.ge.s32.totalorder %s45, 1
      %s47 = scalar_select %p46, 0, %s45
      %s48 = sadd.s32 1, %s25
      %s49 = scalar_select %p46, %s48, %s25
      %p50 = scmp.ge.s32.totalorder %s49, 2
      %s51 = scalar_select %p50, 0, %s49
      %s52 = ssub.s32 %s25, %s51
      %s53 = ssub.s32 %s26, %s47
      %s54 = sor.u32 %s52, %s53
      %s55 = ssub.s32 %s28, %s39
      %s56 = sor.u32 %s54, %s55
      %p57 = scmp.eq.s32.totalorder %s56, 0
      %s59 = sadd.s32 %s58, 1
      %s60 = scalar_select %p57, %s58, %s59
      %p63 = pneg %p57
      %p64 = scmp.eq.s32.totalorder %s18, 1
      %p65 = por %p63, %p64
      %p66 = scmp.ne.s32.totalorder %s58, %s61
      %p67 = scmp.eq.s32.totalorder %s18, 0
      %p68 = por %p66, %p67
      %p69 = scmp.ne.s32.totalorder %s58, %s61
      %p70 = scmp.eq.s32.totalorder %s23, 1
      %p71 = por %p69, %p70
      %p72 = scmp.ne.s32.totalorder %s61, %s62
      %p73 = scmp.eq.s32.totalorder %s23, 0
      %p74 = por %p72, %p73
      %p75 = scmp.ne.s32.totalorder %s61, %s62
      %p76 = scmp.eq.s32.totalorder %s24, 1
      %p77 = por %p75, %p76
      %p79 = scmp.ne.s32.totalorder %s62, %s78
      %p80 = scmp.eq.s32.totalorder %s24, 0
      %p81 = por %p79, %p80
      %s82 = ssub.s32 %s25, %s51
      %s83 = ssub.s32 %s28, %s39
      %s84 = sor.u32 %s82, %s83
      %s85 = ssub.s32 %s27, %s43
      %s86 = sor.u32 %s84, %s85
      %p87 = scmp.eq.s32.totalorder %s86, 0
      %s89 = sadd.s32 %s88, 1
      %s90 = scalar_select %p87, %s88, %s89
      %p93 = pneg %p87
      %p94 = scmp.eq.s32.totalorder %s18, 1
      %p95 = por %p93, %p94
      %p96 = scmp.ne.s32.totalorder %s88, %s91
      %p97 = scmp.eq.s32.totalorder %s18, 0
      %p98 = por %p96, %p97
      %p99 = scmp.ne.s32.totalorder %s88, %s91
      %p100 = scmp.eq.s32.totalorder %s23, 1
      %p101 = por %p99, %p100
      %p102 = scmp.ne.s32.totalorder %s91, %s92
      %p103 = scmp.eq.s32.totalorder %s23, 0
      %p104 = por %p102, %p103
      %p105 = scmp.ne.s32.totalorder %s91, %s92
      %p106 = scmp.eq.s32.totalorder %s24, 1
      %p107 = por %p105, %p106
      %p109 = scmp.ne.s32.totalorder %s92, %s108
      %p110 = scmp.eq.s32.totalorder %s24, 0
      %p111 = por %p109, %p110
      %s112 = ssub.s32 %s25, %s51
      %s113 = ssub.s32 %s27, %s43
      %s114 = sor.u32 %s112, %s113
      %p115 = scmp.eq.s32.totalorder %s114, 0
      %s117 = sadd.s32 %s116, 1
      %s118 = scalar_select %p115, %s116, %s117
      %p121 = pneg %p115
      %p122 = scmp.eq.s32.totalorder %s18, 1
      %p123 = por %p121, %p122
      %p124 = scmp.ne.s32.totalorder %s116, %s119
      %p125 = scmp.eq.s32.totalorder %s18, 0
      %p126 = por %p124, %p125
      %p127 = scmp.ne.s32.totalorder %s116, %s119
      %p128 = scmp.eq.s32.totalorder %s23, 1
      %p129 = por %p127, %p128
      %p130 = scmp.ne.s32.totalorder %s119, %s120
      %p131 = scmp.eq.s32.totalorder %s23, 0
      %p132 = por %p130, %p131
      %p133 = scmp.ne.s32.totalorder %s119, %s120
      %p134 = scmp.eq.s32.totalorder %s24, 1
      %p135 = por %p133, %p134
      %p137 = scmp.ne.s32.totalorder %s120, %s136
      %p138 = scmp.eq.s32.totalorder %s24, 0
      %p139 = por %p137, %p138
      %s140 = ssub.s32 %s25, %s51
      %s141 = ssub.s32 %s26, %s47
      %s142 = sor.u32 %s140, %s141
      %s143 = ssub.s32 %s27, %s43
      %s144 = sor.u32 %s142, %s143
      %p145 = scmp.eq.s32.totalorder %s144, 0
      %s147 = sadd.s32 %s146, 1
      %s148 = scalar_select %p145, %s146, %s147
      %p151 = pneg %p145
      %p152 = scmp.eq.s32.totalorder %s18, 1
      %p153 = por %p151, %p152
      %p154 = scmp.ne.s32.totalorder %s146, %s149
      %p155 = scmp.eq.s32.totalorder %s18, 0
      %p156 = por %p154, %p155
      %p157 = scmp.ne.s32.totalorder %s146, %s149
      %p158 = scmp.eq.s32.totalorder %s23, 1
      %p159 = por %p157, %p158
      %p160 = scmp.ne.s32.totalorder %s149, %s150
      %p161 = scmp.eq.s32.totalorder %s23, 0
      %p162 = por %p160, %p161
      %p163 = scmp.ne.s32.totalorder %s149, %s150
      %p164 = scmp.eq.s32.totalorder %s24, 1
      %p165 = por %p163, %p164
      %p167 = scmp.ne.s32.totalorder %s150, %s166
      %p168 = scmp.eq.s32.totalorder %s24, 0
      %p169 = por %p167, %p168
      %p170 = scmp.le.s32.totalorder 1, %s18
      %p171 = scmp.lt.s32.totalorder %s18, 3
      %p172 = pnand %p170, %p171
      %p173 = pneg %p172
      // Predicated region
      $region9: #{tpu_custom_call.1} parent=5 // pred_check
        _
      $region10: #{tpu_custom_call.1} parent=5 // pred_check_branch
        %175 = sbr.rel (%p172) target = $region12
      $region11: #{tpu_custom_call.1} parent=5 // pred_region
        %s176 = ssub.s32 %s18, 1
      $region12: #{tpu_custom_call.1} parent=5 // pred_fallthru
        _
      %p177 = scmp.lt.s32.totalorder %s18, 2
      // Predicated region
      $region13: #{tpu_custom_call.1} parent=5 // pred_check
        %p178 = pneg %p177
      $region14: #{tpu_custom_call.1} parent=5 // pred_check_branch
        %180 = sbr.rel (%p178) target = $region16
      $region15: #{tpu_custom_call.1} parent=5 // pred_region
        // Predicated region
        $region17: #{tpu_custom_call.1} parent=15 // pred_check
          %p181 = pneg %p68
        $region18: #{tpu_custom_call.1} parent=15 // pred_check_branch
          %183 = sbr.rel (%p181) target = $region20
        $region19: #{tpu_custom_call.1} parent=15 // pred_region
          %s184 = sand.u32 %s58, 1
          %s185 = scalar_lea.sflag [#allocation3], %s184
          %s186 = sand.u32 %s58, 1
          %s187 = smul.addr %s186, 4
          %s188 = scalar_lea.vmem [#allocation2], %s187
          %s189 = smul.u32 2, %s25
          %s191 = ssub.s32 64, 64
          %192 = vsyncadd %s185, %s191
          %s193 = sadd.s32 %s28, %s26
          %s194 = sadd.s32 %s193, %s189
          %s195 = smul.addr %s194, 32
          %s196 = scalar_lea.hbm %s0, %s195
          %s197 = sshll.u32 %s188, 4
          %s198 = int_to_ptr.vmem [resolvable:$true] %s197
          %203 = dma.hbm_to_vmem [thread:$0]  %s196, 64, %s198, %s185, 32, 32, 2
        $region20: #{tpu_custom_call.1} parent=15 // pred_fallthru
          _
        // Predicated region
        $region21: #{tpu_custom_call.1} parent=15 // pred_check
          %p204 = pneg %p98
        $region22: #{tpu_custom_call.1} parent=15 // pred_check_branch
          %206 = sbr.rel (%p204) target = $region24
        $region23: #{tpu_custom_call.1} parent=15 // pred_region
          %s207 = sand.u32 %s18, 1
          %s208 = scalar_lea.sflag [#allocation6], %s207
          %s209 = sand.u32 %s88, 1
          %s210 = smul.addr %s209, 32
          %s211 = scalar_lea.vmem [#allocation5], %s210
          %s212 = smul.u32 2, %s25
          %s213 = smul.u32 2, %s28
          %s215 = ssub.s32 512, 512
          %216 = vsyncadd %s208, %s215
          %s217 = sadd.s32 %s27, %s213
          %s218 = smul.addr %s212, 2
          %s219 = sadd.s32 %s217, %s218
          %s220 = smul.addr %s219, 128
          %s221 = scalar_lea.hbm %s1, %s220
          %s222 = sshll.u32 %s211, 4
          %s223 = int_to_ptr.vmem [resolvable:$true] %s222
          %228 = dma.hbm_to_vmem [thread:$0]  %s221, 512, %s223, %s208, 128, 128, 8
        $region24: #{tpu_custom_call.1} parent=15 // pred_fallthru
          _
        // Predicated region
        $region25: #{tpu_custom_call.1} parent=15 // pred_check
          %p229 = pneg %p126
        $region26: #{tpu_custom_call.1} parent=15 // pred_check_branch
          %231 = sbr.rel (%p229) target = $region28
        $region27: #{tpu_custom_call.1} parent=15 // pred_region
          %s232 = sand.u32 %s18, 1
          %s233 = scalar_lea.sflag [#allocation6], %s232
          %s234 = sand.u32 %s116, 1
          %s235 = smul.addr %s234, 2
          %s236 = scalar_lea.vmem [#allocation7], %s235
          %s237 = smul.u32 2, %s25
          %s239 = ssub.s32 32, 32
          %240 = vsyncadd %s233, %s239
          %s241 = sadd.s32 %s27, %s237
          %s242 = smul.addr %s241, 16
          %s243 = scalar_lea.hbm %s2, %s242
          %s244 = sshll.u32 %s236, 4
          %s245 = int_to_ptr.vmem [resolvable:$true] %s244
          %250 = dma.hbm_to_vmem [thread:$0]  %s243, 32, %s245, %s233, 16, 16, 1
        $region28: #{tpu_custom_call.1} parent=15 // pred_fallthru
          _
      $region16: #{tpu_custom_call.1} parent=5 // pred_fallthru
        _
      %p251 = scmp.le.s32.totalorder 1, %s18
      %p252 = scmp.lt.s32.totalorder %s18, 3
      %p253 = pnand %p251, %p252
      %p254 = pneg %p253
      // Predicated region
      $region29: #{tpu_custom_call.1} parent=5 // pred_check
        _
      $region30: #{tpu_custom_call.1} parent=5 // pred_check_branch
        %256 = sbr.rel (%p253) target = $region32
      $region31: #{tpu_custom_call.1} parent=5 // pred_region
        %s257 = ssub.s32 %s18, 1
        %s258 = sand.u32 %s61, 1
        %s259 = scalar_lea.sflag [#allocation3], %s258
        %s260 = sand.u32 %s61, 1
        %s261 = smul.addr %s260, 4
        %s262 = scalar_lea.vmem [#allocation2], %s261
        // Predicated region
        $region33: #{tpu_custom_call.1} parent=31 // pred_check
          %p263 = pneg %p74
        $region34: #{tpu_custom_call.1} parent=31 // pred_check_branch
          %265 = sbr.rel (%p263) target = $region36
        $region35: #{tpu_custom_call.1} parent=31 // pred_region
          %266 = dma.done %s259, 64
        $region36: #{tpu_custom_call.1} parent=31 // pred_fallthru
          _
        %s267 = sand.u32 %s23, 1
        %s268 = scalar_lea.sflag [#allocation6], %s267
        %s269 = sand.u32 %s91, 1
        %s270 = smul.addr %s269, 32
        %s271 = scalar_lea.vmem [#allocation5], %s270
        // Predicated region
        $region37: #{tpu_custom_call.1} parent=31 // pred_check
          %p272 = pneg %p104
        $region38: #{tpu_custom_call.1} parent=31 // pred_check_branch
          %274 = sbr.rel (%p272) target = $region40
        $region39: #{tpu_custom_call.1} parent=31 // pred_region
          %275 = dma.done %s268, 512
        $region40: #{tpu_custom_call.1} parent=31 // pred_fallthru
          _
        %s276 = sand.u32 %s23, 1
        %s277 = scalar_lea.sflag [#allocation6], %s276
        %s278 = sand.u32 %s119, 1
        %s279 = smul.addr %s278, 2
        %s280 = scalar_lea.vmem [#allocation7], %s279
        // Predicated region
        $region41: #{tpu_custom_call.1} parent=31 // pred_check
          %p281 = pneg %p132
        $region42: #{tpu_custom_call.1} parent=31 // pred_check_branch
          %283 = sbr.rel (%p281) target = $region44
        $region43: #{tpu_custom_call.1} parent=31 // pred_region
          %284 = dma.done %s277, 32
        $region44: #{tpu_custom_call.1} parent=31 // pred_fallthru
          _
        %s285 = sand.u32 %s61, 1
        %s286 = scalar_lea.sflag [#allocation3], %s285
        %s287 = sand.u32 %s61, 1
        %s288 = smul.addr %s287, 4
        %s289 = scalar_lea.vmem [#allocation2], %s288
        %p290 = pneg %p74
        %p291 = pneg %p71
        %s292 = sand.u32 %s23, 1
        %s293 = scalar_lea.sflag [#allocation6], %s292
        %s294 = sand.u32 %s91, 1
        %s295 = smul.addr %s294, 32
        %s296 = scalar_lea.vmem [#allocation5], %s295
        %p297 = pneg %p104
        %p298 = pneg %p101
        %s299 = sand.u32 %s23, 1
        %s300 = scalar_lea.sflag [#allocation6], %s299
        %s301 = sand.u32 %s119, 1
        %s302 = smul.addr %s301, 2
        %s303 = scalar_lea.vmem [#allocation7], %s302
        %p304 = pneg %p132
        %p305 = pneg %p129
        %p306 = pneg %p162
        %p307 = pneg %p159
        %s308 = sand.u32 %s149, 1
        %s309 = scalar_lea.sflag [#allocation4], %s308
        %s310 = sand.u32 %s149, 1
        %s311 = smul.addr %s310, 4
        %s312 = scalar_lea.vmem [#allocation8], %s311
        %s313 = smul.u32 2, %s29
        %s314 = smul.u32 2, %s29
        %s315 = smul.u32 2, %s32
        %s316 = smul.u32 2, %s29
        %s317 = smul.u32 2, %s29
        %p318 = scmp.eq.s32.totalorder %s32, 0
        // Predicated region
        $region45: #{tpu_custom_call.1} parent=31 // pred_check
          %p319 = pneg %p318
        $region46: #{tpu_custom_call.1} parent=31 // pred_check_branch
          %321 = sbr.rel (%p319) target = $region48
        $region47: #{tpu_custom_call.1} parent=31 // pred_region
          %322 = vst [vmem:[%s312] sm:$0x3] 0.0
          %323 = vst [vmem:[%s312 + $0x2] sm:$0x3] 0.0
        $region48: #{tpu_custom_call.1} parent=31 // pred_fallthru
          _
        %v324 = vld [vmem:[%s312] sm:$0x3]
        %v325 = vld [vmem:[%s312 + $0x2] sm:$0x3]
        %v326 = vld [vmem:[%s262] sm:$0x3]
        %v327 = vld [vmem:[%s262 + $0x2] sm:$0x3]
        %v328 = vld [vmem:[%s271] sm:$0xff]
        %v329 = vld [vmem:[%s271 + $0x8] sm:$0xff]
        %v330 = vld [vmem:[%s271 + $0x10] sm:$0xff]
        %v331 = vld [vmem:[%s271 + $0x18] sm:$0xff]
        %vm332 = vcmask 130048
        %v334 = vsel %vm332, %v326, 0
        %336 = vmatprep.subr.mxu0 0.0
        %337 = vmatpush1.msra.mxu0 0.0
        %338 = vmatprep.subr.mxu0 0.0
        %339 = vmatpush1.msra.mxu0 0.0
        %340 = vmatprep.subr.mxu0 0.0
        %341 = vmatpush1.msra.mxu0 0.0
        %342 = vmatprep.subr.mxu0 0.0
        %343 = vmatpush1.msra.mxu0 0.0
        %344 = vmatprep.subr.mxu0 0.0
        %345 = vmatpush1.msra.mxu0 0.0
        %346 = vmatprep.subr.mxu0 0.0
        %347 = vmatpush1.msra.mxu0 0.0
        %348 = vmatprep.subr.mxu0 0.0
        %349 = vmatpush1.msra.mxu0 0.0
        %350 = vmatprep.subr.mxu0 0.0
        %351 = vmatpush1.msra.mxu0 0.0
        %352 = vmatprep.subr.mxu0 0.0
        %353 = vmatpush1.msra.mxu0 0.0
        %354 = vmatprep.subr.mxu0 0.0
        %355 = vmatpush1.msra.mxu0 0.0
        %356 = vmatprep.subr.mxu0 0.0
        %357 = vmatpush1.msra.mxu0 0.0
        %358 = vmatprep.subr.mxu0 0.0
        %359 = vmatpush1.msra.mxu0 0.0
        %360 = vmatprep.subr.mxu0 0.0
        %361 = vmatpush1.msra.mxu0 0.0
        %362 = vmatprep.subr.mxu0 0.0
        %363 = vmatpush1.msra.mxu0 0.0
        %364 = vmatprep.subr.mxu0 0.0
        %365 = vmatpush1.msra.mxu0 %v329
        %366 = vmatprep.subr.mxu0 0.0
        %367 = vmatpush1.msra.mxu0 %v328
        %368 = vmatprep.subr.mxu0 0.0
        %369 = vmatpush2.msra.mxu0 0.0
        %370 = vmatprep.subr.mxu0 0.0
        %371 = vmatpush2.msra.mxu0 0.0
        %372 = vmatprep.subr.mxu0 0.0
        %373 = vmatpush2.msra.mxu0 0.0
        %374 = vmatprep.subr.mxu0 0.0
        %375 = vmatpush2.msra.mxu0 0.0
        %376 = vmatprep.subr.mxu0 0.0
        %377 = vmatpush2.msra.mxu0 0.0
        %378 = vmatprep.subr.mxu0 0.0
        %379 = vmatpush2.msra.mxu0 0.0
        %380 = vmatprep.subr.mxu0 0.0
        %381 = vmatpush2.msra.mxu0 0.0
        %382 = vmatprep.subr.mxu0 0.0
        %383 = vmatpush2.msra.mxu0 0.0
        %384 = vmatprep.subr.mxu0 0.0
        %385 = vmatpush2.msra.mxu0 0.0
        %386 = vmatprep.subr.mxu0 0.0
        %387 = vmatpush2.msra.mxu0 0.0
        %388 = vmatprep.subr.mxu0 0.0
        %389 = vmatpush2.msra.mxu0 0.0
        %390 = vmatprep.subr.mxu0 0.0
        %391 = vmatpush2.msra.mxu0 0.0
        %392 = vmatprep.subr.mxu0 0.0
        %393 = vmatpush2.msra.mxu0 0.0
        %394 = vmatprep.subr.mxu0 0.0
        %395 = vmatpush2.msra.mxu0 0.0
        %396 = vmatprep.subr.mxu0 0.0
        %397 = vmatpush2.msra.mxu0 0.0
        %398 = vmatprep.subr.mxu0 0.0
        %399 = vmatpush2.msra.mxu0 0.0
        %400 = vmatprep.mubr.f32.mxu0 0.0
        %401 = vmatmul.mubr.f32.gmra.mxu0 %v334
        %v402 = vpop.f32.mrf.mxu0
        %v403 = vadd.f32 0.0, %v402
        %v404 = vpop.f32.mrf.mxu0
        %405 = vdwg.mxu0
        %v407 = vsel %vm332, %v327, 0
        %409 = vmatprep.subr.mxu0 0.0
        %410 = vmatpush1.msra.mxu0 0.0
        %411 = vmatprep.subr.mxu0 0.0
        %412 = vmatpush1.msra.mxu0 0.0
        %413 = vmatprep.subr.mxu0 0.0
        %414 = vmatpush1.msra.mxu0 0.0
        %415 = vmatprep.subr.mxu0 0.0
        %416 = vmatpush1.msra.mxu0 0.0
        %417 = vmatprep.subr.mxu0 0.0
        %418 = vmatpush1.msra.mxu0 0.0
        %419 = vmatprep.subr.mxu0 0.0
        %420 = vmatpush1.msra.mxu0 0.0
        %421 = vmatprep.subr.mxu0 0.0
        %422 = vmatpush1.msra.mxu0 0.0
        %423 = vmatprep.subr.mxu0 0.0
        %424 = vmatpush1.msra.mxu0 0.0
        %425 = vmatprep.subr.mxu0 0.0
        %426 = vmatpush1.msra.mxu0 0.0
        %427 = vmatprep.subr.mxu0 0.0
        %428 = vmatpush1.msra.mxu0 0.0
        %429 = vmatprep.subr.mxu0 0.0
        %430 = vmatpush1.msra.mxu0 0.0
        %431 = vmatprep.subr.mxu0 0.0
        %432 = vmatpush1.msra.mxu0 0.0
        %433 = vmatprep.subr.mxu0 0.0
        %434 = vmatpush1.msra.mxu0 0.0
        %435 = vmatprep.subr.mxu0 0.0
        %436 = vmatpush1.msra.mxu0 0.0
        %437 = vmatprep.subr.mxu0 0.0
        %438 = vmatpush1.msra.mxu0 %v331
        %439 = vmatprep.subr.mxu0 0.0
        %440 = vmatpush1.msra.mxu0 %v330
        %441 = vmatprep.subr.mxu0 0.0
        %442 = vmatpush2.msra.mxu0 0.0
        %443 = vmatprep.subr.mxu0 0.0
        %444 = vmatpush2.msra.mxu0 0.0
        %445 = vmatprep.subr.mxu0 0.0
        %446 = vmatpush2.msra.mxu0 0.0
        %447 = vmatprep.subr.mxu0 0.0
        %448 = vmatpush2.msra.mxu0 0.0
        %449 = vmatprep.subr.mxu0 0.0
        %450 = vmatpush2.msra.mxu0 0.0
        %451 = vmatprep.subr.mxu0 0.0
        %452 = vmatpush2.msra.mxu0 0.0
        %453 = vmatprep.subr.mxu0 0.0
        %454 = vmatpush2.msra.mxu0 0.0
        %455 = vmatprep.subr.mxu0 0.0
        %456 = vmatpush2.msra.mxu0 0.0
        %457 = vmatprep.subr.mxu0 0.0
        %458 = vmatpush2.msra.mxu0 0.0
        %459 = vmatprep.subr.mxu0 0.0
        %460 = vmatpush2.msra.mxu0 0.0
        %461 = vmatprep.subr.mxu0 0.0
        %462 = vmatpush2.msra.mxu0 0.0
        %463 = vmatprep.subr.mxu0 0.0
        %464 = vmatpush2.msra.mxu0 0.0
        %465 = vmatprep.subr.mxu0 0.0
        %466 = vmatpush2.msra.mxu0 0.0
        %467 = vmatprep.subr.mxu0 0.0
        %468 = vmatpush2.msra.mxu0 0.0
        %469 = vmatprep.subr.mxu0 0.0
        %470 = vmatpush2.msra.mxu0 0.0
        %471 = vmatprep.subr.mxu0 0.0
        %472 = vmatpush2.msra.mxu0 0.0
        %473 = vmatprep.mubr.f32.mxu0 0.0
        %474 = vmatmul.mubr.f32.gmra.mxu0 %v407
        %v475 = vpop.f32.mrf.mxu0
        %v476 = vadd.f32 0.0, %v475
        %v477 = vpop.f32.mrf.mxu0
        %478 = vdwg.mxu0
        %v479 = vadd.f32 %v324, %v403
        %v480 = vadd.f32 %v325, %v476
        %481 = vst [vmem:[%s312] sm:$0x3] %v479
        %482 = vst [vmem:[%s312 + $0x2] sm:$0x3] %v480
        // Predicated region
        $region49: #{tpu_custom_call.1} parent=31 // pred_check
          %p483 = pneg %p318
        $region50: #{tpu_custom_call.1} parent=31 // pred_check_branch
          %485 = sbr.rel (%p483) target = $region52
        $region51: #{tpu_custom_call.1} parent=31 // pred_region
          %v486 = vld [vmem:[%s312] sm:$0x3]
          %v487 = vld [vmem:[%s312 + $0x2] sm:$0x3]
          %v488 = vld [vmem:[%s280] sm:$0x1]
          %v489 = vld [vmem:[%s280 + $0x1] sm:$0x1]
          %v492 = vlaneseq
          %v493 = vshrl.u32 %v492, 7
          %v494 = vsub.s32 0, %v493
          %v495 = vrot.slane %v488, %v494
          %v496 = vlaneseq
          %v497 = vshrl.u32 %v496, 7
          %v498 = vsub.s32 0, %v497
          %v499 = vrot.slane %v489, %v498
          %v502 = vadd.f32 %v486, %v495
          %v503 = vadd.f32 %v487, %v499
          %504 = vst [vmem:[%s312] sm:$0x3] %v502
          %505 = vst [vmem:[%s312 + $0x2] sm:$0x3] %v503
        $region52: #{tpu_custom_call.1} parent=31 // pred_fallthru
          _
        %s506 = sand.u32 %s149, 1
        %s507 = scalar_lea.sflag [#allocation4], %s506
        %s508 = sand.u32 %s149, 1
        %s509 = smul.addr %s508, 4
        %s510 = scalar_lea.vmem [#allocation8], %s509
        // Predicated region
        $region53: #{tpu_custom_call.1} parent=31 // pred_check
          %p511 = pneg %p159
        $region54: #{tpu_custom_call.1} parent=31 // pred_check_branch
          %513 = sbr.rel (%p511) target = $region56
        $region55: #{tpu_custom_call.1} parent=31 // pred_region
          %s514 = smul.u32 2, %s29
          %s516 = ssub.s32 64, 64
          %517 = vsyncadd %s507, %s516
          %s518 = sadd.s32 %s31, %s30
          %s519 = sadd.s32 %s518, %s514
          %s520 = smul.addr %s519, 32
          %s521 = scalar_lea.hbm %s3, %s520
          %s522 = sshll.u32 %s510, 4
          %s523 = int_to_ptr.vmem [resolvable:$true] %s522
          %528 = dma.vmem_to_hbm [thread:$0]  %s523, 64, %s521, %s507, 32, 32, 2
        $region56: #{tpu_custom_call.1} parent=31 // pred_fallthru
          _
      $region32: #{tpu_custom_call.1} parent=5 // pred_fallthru
        _
      %p529 = scmp.le.s32.totalorder 2, %s18
      // Predicated region
      $region57: #{tpu_custom_call.1} parent=5 // pred_check
        %p530 = pneg %p529
      $region58: #{tpu_custom_call.1} parent=5 // pred_check_branch
        %532 = sbr.rel (%p530) target = $region60
      $region59: #{tpu_custom_call.1} parent=5 // pred_region
        %s533 = ssub.s32 %s18, 2
        // Predicated region
        $region61: #{tpu_custom_call.1} parent=59 // pred_check
          %p534 = pneg %p165
        $region62: #{tpu_custom_call.1} parent=59 // pred_check_branch
          %536 = sbr.rel (%p534) target = $region64
        $region63: #{tpu_custom_call.1} parent=59 // pred_region
          %s537 = sand.u32 %s150, 1
          %s538 = scalar_lea.sflag [#allocation4], %s537
          %s539 = sand.u32 %s150, 1
          %s540 = smul.addr %s539, 4
          %s541 = scalar_lea.vmem [#allocation8], %s540
          %542 = dma.done %s538, 64
        $region64: #{tpu_custom_call.1} parent=59 // pred_fallthru
          _
      $region60: #{tpu_custom_call.1} parent=5 // pred_fallthru
        _
    $region6: #{tpu_custom_call.1} parent=1 // loop_footer
      %s22 = sadd.s32 1, %s18
    $region7: #{tpu_custom_call.1} parent=1 // loop_footer_branch
      %17 = sbr.rel target = $region3
    $region8: #{tpu_custom_call.1} parent=1 // loop_exit
      _
    %543 = vsyncpa [#allocation3], 1
    %s544 = scalar_lea.sflag [#allocation3], 1
    %545 = vsyncpa %s544, 1
    %546 = vsyncpa [#allocation6], 1
    %s547 = scalar_lea.sflag [#allocation6], 1
    %548 = vsyncpa %s547, 1
    %549 = vsyncpa [#allocation4], 1
    %s550 = scalar_lea.sflag [#allocation4], 1
    %551 = vsyncpa %s550, 1

</llo_original>
